<compile_context>
chip_gen: v7x
topology: tpu7x:2x2x1
jax: 0.10.0
libtpu: 0.0.40
codegen_flags: <defaults>
</compile_context>

<pallas_src>
import jax
import jax.numpy as jnp
from jax.experimental import pallas as pl
from jax.experimental.pallas import tpu as pltpu

_HIGHEST = jax.lax.Precision.HIGHEST
_LANES = 128


# --------------------------------- kernels -----------------------------------

def _prediction_kernel_standard(x_ref, wf_ref, o_ref):
    """x_ref: (B, ts, D)   wf_ref: (D, C)   o_ref: (B, ts, C)."""
    B, ts, D = x_ref.shape
    C = wf_ref.shape[1]

    # Fold batch into the matmul M dim: one MXU pass, f32 accumulation.
    x2d = x_ref[...].reshape(B * ts, D)
    logits = jnp.dot(x2d, wf_ref[...],
                     preferred_element_type=jnp.float32,
                     precision=_HIGHEST)                        # (B*ts, C)
    logits = logits.reshape(B, ts, C)

    # NOTE: the fused bias (b1 @ W2^T + b2) is omitted on purpose: it depends
    # only on the class index, and the softmax below reduces over dim 0
    # (batch), so adding it is a mathematical no-op.
    # TODO(synk): training-mode dropout (p=0.1) depends on PyTorch's RNG stream
    # and is not reproduced; eval-mode identity (inference) is implemented.

    # Legacy nn.Softmax() with implicit dim on a 3-D tensor -> dim=0 (batch).
    # INVARIANT: every tile carries the FULL batch axis (see BlockSpecs below).
    m = jnp.max(logits, axis=0, keepdims=True)
    e = jnp.exp(logits - m)
    s = jnp.sum(e, axis=0, keepdims=True)
    o_ref[...] = (e / s).astype(o_ref.dtype)


def _prediction_kernel_lane_dense(x_ref, wft_ref, o_ref):
    """Lane-dense epilogue (v7x). x_ref: (B, ts, D)  wft_ref: (C, D)  o_ref: (C, B, ts)."""
    B, ts, D = x_ref.shape
    C = wft_ref.shape[0]

    x2d = x_ref[...].reshape(B * ts, D)
    # (C, D) contracted with (B*ts, D) over D -> (C, B*ts): MXU matmul with the
    # rhs transposed via dimension numbers (no explicit big transpose).  The
    # long B*ts axis lands on the 128-lane axis, so exp / reductions / stores
    # below run on lane-dense vregs instead of 3/128-occupied ones.
    lt = jax.lax.dot_general(
        wft_ref[...], x2d,
        dimension_numbers=(((1,), (1,)), ((), ())),
        preferred_element_type=jnp.float32,
        precision=_HIGHEST)                                     # (C, B*ts)
    lt = lt.reshape(C, B, ts)                                   # ts stays minor (lanes)

    # Softmax over the batch axis (legacy nn.Softmax() dim=0 for 3-D input).
    m = jnp.max(lt, axis=1, keepdims=True)
    e = jnp.exp(lt - m)
    s = jnp.sum(e, axis=1, keepdims=True)
    o_ref[...] = (e / s).astype(o_ref.dtype)


# ------------------------------ tiling helpers --------------------------------

def _round_up(x, m):
    return (x + m - 1) // m * m


def _device_kind():
    try:
        return jax.devices()[0].device_kind.lower()
    except Exception:   # defensive: never let device sniffing break the kernel
        return ""


def _is_v7x(kind):
    return ("v7" in kind) or ("7x" in kind)


def _has_two_tensorcores(kind):
    # v4 / v5p / v7x have 2 TensorCores per chip; v5e / v6e have 1.
    return ("v4" in kind) or ("v5p" in kind) or _is_v7x(kind)


def _tile_footprint_bytes(B, ts, D, C, itemsize, lane_dense):
    """Per-grid-step VMEM footprint: double-buffered x / weight / output tiles
    plus the lane- or sublane-padded f32 temporaries created in the kernel."""
    x_bytes = 2 * B * ts * D * itemsize                              # double-buffered input
    if lane_dense:
        w_bytes = 2 * _round_up(C, 8) * _round_up(D, _LANES) * itemsize
        out_bytes = 2 * C * _round_up(B, 8) * ts * itemsize
        tmp_bytes = 3 * _round_up(C, 8) * B * ts * 4                 # lt, e, out (dense)
        tmp_bytes += _round_up(C, 8) * B * ts * 4                    # relayout headroom
    else:
        w_bytes = 2 * _round_up(D, 8) * _round_up(C, _LANES) * itemsize
        out_bytes = 2 * B * ts * _round_up(C, _LANES) * itemsize     # C lane-padded to 128
        tmp_bytes = 3 * B * ts * _round_up(C, _LANES) * 4            # logits, e, out padded
    return x_bytes + w_bytes + out_bytes + tmp_bytes


def _pick_ts(B, S, D, C, itemsize, lane_dense, two_cores, vmem_budget_bytes):
    """Largest sequence tile that divides S, satisfies layout alignment for
    every block it appears in, and keeps the per-step VMEM footprint within
    budget.  Prefers >= 2 grid steps (real double-buffered pipeline); on 2-TC
    chips additionally prefers an even number of steps."""
    sub = {4: 8, 2: 16, 1: 32}.get(itemsize, 8)        # dtype-aware sublane multiple
    if lane_dense:
        # ts is the LANE axis of the (C, B, ts) output block -> multiple of 128
        # (or the full sequence length).
        aligned = [t for t in range(1, S + 1)
                   if S % t == 0 and (t % _LANES == 0 or t == S)]
    else:
        aligned = [t for t in range(sub, S + 1, sub) if S % t == 0]
    if not aligned:
        aligned = [S]                                   # full-dim blocks are always legal

    fits = [t for t in aligned
            if _tile_footprint_bytes(B, t, D, C, itemsize, lane_dense)
            <= vmem_budget_bytes]
    pipelined = [t for t in fits if S // t >= 2]
    if pipelined:
        if two_cores:
            even = [t for t in pipelined if (S // t) % 2 == 0]
            if even:
                return max(even)
        return max(pipelined)
    if fits:
        return max(fits)                                # single-step grid, within VMEM
    # Nothing fits the budget: take the smallest aligned tile (least VMEM).
    # TODO(synk): for very large B*D the proper fix is an online softmax over a
    # B grid axis (flash-style running max/sum); not implemented here.
    return min(aligned)


# --------------------------------- wrapper ------------------------------------

def prediction_layer(x, w1, b1, w2, b2, *, ts=None, lane_dense=None,
                     vmem_budget_bytes=None):
    """BiMPM PredictionLayer forward.

    x: (B, S, D); w1: (H, D); b1: (H,); w2: (C, H); b2: (C,)   (PyTorch layouts)
    Returns softmax(linear2(linear1(x)), dim=0) with shape (B, S, C).
    """
    B, S, D = x.shape
    H, D1 = w1.shape
    C, H1 = w2.shape
    assert D1 == D and H1 == H

    kind = _device_kind()
    if lane_dense is None:
        # Lane-dense epilogue only pays off where HBM is fast enough that the
        # 3/128-lane exp + masked stores stop hiding under the DMA (v7x).
        lane_dense = _is_v7x(kind)
    two_cores = _has_two_tensorcores(kind)
    if vmem_budget_bytes is None:
        # v7x: 64 MiB physical VMEM per TensorCore; v5e/v6e: 128 MiB physical.
        vmem_budget_bytes = (24 << 20) if _is_v7x(kind) else (48 << 20)

    # ---- Algebraic fusion of the two linears (cheap one-time XLA ops) --------
    # No nonlinearity between linear1 and linear2, so
    #   linear2(linear1(x)) = x @ (W1^T W2^T) + (b1 W2^T + b2).
    # The bias depends only on the class index and cancels under the batch-axis
    # softmax, so it is dropped entirely.
    w1f = jnp.asarray(w1, jnp.float32)
    w2f = jnp.asarray(w2, jnp.float32)
    wf_t = jnp.dot(w2f, w1f, precision=_HIGHEST).astype(x.dtype)   # (C, D) = (W1^T W2^T)^T

    itemsize = jnp.dtype(x.dtype).itemsize
    if ts is None:
        ts = _pick_ts(B, S, D, C, itemsize, lane_dense, two_cores, vmem_budget_bytes)
    assert S % ts == 0, "ts must divide S"

    footprint = _tile_footprint_bytes(B, ts, D, C, itemsize, lane_dense)
    # Explicit scoped-VMEM limit: computed footprint + headroom, kept under
    # v7x's 64 MiB physical VMEM per TensorCore.
    vmem_limit = int(min(max(32 << 20, footprint + (16 << 20)), 60 << 20))

    cost = pl.CostEstimate(
        flops=2 * B * S * D * C + 5 * B * S * C,
        transcendentals=B * S * C,
        bytes_accessed=(B * S * D + D * C + B * S * C) * itemsize,
    )
    cparams = pltpu.CompilerParams(
        dimension_semantics=("parallel",),          # S-tiles are independent
        vmem_limit_bytes=vmem_limit,
    )
    # TODO(synk): on v7x, sweep pipeline_mode=pl.Buffered(3) on the x BlockSpec
    # after profiling; default double-buffering is used here.

    if lane_dense:
        grid_spec = pl.GridSpec(
            grid=(S // ts,),
            in_specs=[
                # Every tile carries the FULL batch axis: the legacy
                # nn.Softmax() (implicit dim=0 on 3-D input) reduces over B,
                # so B must never be tiled or sharded across cores.
                pl.BlockSpec((B, ts, D), lambda s: (0, s, 0)),    # x tile
                pl.BlockSpec((C, D), lambda s: (0, 0)),           # fused weight^T (resident)
            ],
            out_specs=pl.BlockSpec((C, B, ts), lambda s: (0, 0, s)),
        )
        out_cbs = pl.pallas_call(
            _prediction_kernel_lane_dense,
            out_shape=jax.ShapeDtypeStruct((C, B, S), x.dtype),
            grid_spec=grid_spec,
            compiler_params=cparams,
            cost_estimate=cost,
        )(x, wf_t)
        # Tiny (B*S*C elements) layout fixup back to the PyTorch output shape.
        return jnp.transpose(out_cbs, (1, 2, 0))

    grid_spec = pl.GridSpec(
        grid=(S // ts,),
        in_specs=[
            pl.BlockSpec((B, ts, D), lambda s: (0, s, 0)),        # x tile
            pl.BlockSpec((D, C), lambda s: (0, 0)),               # fused weight (resident)
        ],
        out_specs=pl.BlockSpec((B, ts, C), lambda s: (0, s, 0)),
    )
    return pl.pallas_call(
        _prediction_kernel_standard,
        out_shape=jax.ShapeDtypeStruct((B, S, C), x.dtype),
        grid_spec=grid_spec,
        compiler_params=cparams,
        cost_estimate=cost,
    )(x, wf_t.T)


# -------------------------------- reference -----------------------------------

def reference(x, w1, b1, w2, b2):
    h = jnp.dot(x, w1.T, precision=_HIGHEST) + b1
    logits = jnp.dot(h, w2.T, precision=_HIGHEST) + b2
    return jax.nn.softmax(logits, axis=0)   # legacy nn.Softmax() dim for 3-D input


if __name__ == "__main__":
    # Shapes consistent with the module docstring:
    #   input_size = 4 * hidden_size, output_size = num classes (3).
    batch, seq = 2, 16
    hidden_size = 32
    input_size = 4 * hidden_size            # 128
    output_size = 3

    key = jax.random.PRNGKey(0)
    kx, kw1, kb1, kw2, kb2 = jax.random.split(key, 5)

    x = jax.random.normal(kx, (batch, seq, input_size), dtype=jnp.float32)

    # Deterministic PyTorch-style uniform(-1/sqrt(fan_in), 1/sqrt(fan_in)) init.
    lim1 = 1.0 / (input_size ** 0.5)
    w1 = jax.random.uniform(kw1, (hidden_size, input_size), jnp.float32, -lim1, lim1)
    b1 = jax.random.uniform(kb1, (hidden_size,), jnp.float32, -lim1, lim1)
    lim2 = 1.0 / (hidden_size ** 0.5)
    w2 = jax.random.uniform(kw2, (output_size, hidden_size), jnp.float32, -lim2, lim2)
    b2 = jax.random.uniform(kb2, (output_size,), jnp.float32, -lim2, lim2)

    ref = reference(x, w1, b1, w2, b2)

    # Exercise the auto-detected path plus both explicit epilogue variants so
    # the v7x lane-dense path and the standard path are both verified.
    outs = {
        "auto": prediction_layer(x, w1, b1, w2, b2),
        "standard": prediction_layer(x, w1, b1, w2, b2, lane_dense=False),
        "lane_dense": prediction_layer(x, w1, b1, w2, b2, lane_dense=True),
    }
    for name, out in outs.items():
        out = jax.block_until_ready(out)
        assert out.shape == (batch, seq, output_size), name
        assert jnp.allclose(out, ref, atol=1e-3, rtol=1e-3), \
            f"mismatch vs JAX reference ({name})"

    print("KERNEL_OK")
</pallas_src>

<mosaic_0001>
module attributes {stable_mosaic.version = 11 : i64} {
  func.func @_prediction_kernel_standard(%arg0: i32, %arg1: memref<2x8x128xf32, #tpu.memory_space<vmem>>, %arg2: memref<128x3xf32, #tpu.memory_space<vmem>>, %arg3: memref<2x8x3xf32, #tpu.memory_space<vmem>>) attributes {dimension_semantics = [#tpu.dimension_semantics<parallel>], iteration_bounds = array<i64: 2>, scalar_prefetch = 0 : i64, scratch_operands = 0 : i64, tpu.core_type = #tpu.core_type<tc>, window_params = [{transform_indices = @transform_0, window_bounds = array<i64: 2, 8, 128>}, {pipeline_mode = #tpu.pipeline_mode<synchronous>, transform_indices = @transform_1, window_bounds = array<i64: 128, 3>}, {transform_indices = @transform_2, window_bounds = array<i64: 2, 8, 3>}]} {
    %c0 = arith.constant 0 : index
    %c0_0 = arith.constant 0 : index
    %c0_1 = arith.constant 0 : index
    %0 = vector.load %arg1[%c0, %c0_0, %c0_1] : memref<2x8x128xf32, #tpu.memory_space<vmem>>, vector<2x8x128xf32>
    %1 = vector.shape_cast %0 : vector<2x8x128xf32> to vector<16x128xf32>
    %c0_2 = arith.constant 0 : index
    %c0_3 = arith.constant 0 : index
    %2 = vector.load %arg2[%c0_2, %c0_3] : memref<128x3xf32, #tpu.memory_space<vmem>>, vector<128x3xf32>
    %cst = arith.constant dense<0.000000e+00> : vector<16x3xf32>
    %3 = tpu.matmul %1, %2, %cst {dimension_numbers = #tpu.dot_dimension_numbers<[1], [0], [0], [1], [0, 0, 1, 1], [], []>, precision = #tpu.contract_precision<fp32>} : vector<16x128xf32>, vector<128x3xf32>, vector<16x3xf32> -> vector<16x3xf32>
    %4 = vector.shape_cast %3 : vector<16x3xf32> to vector<2x8x3xf32>
    %cst_4 = arith.constant dense<0xFF800000> : vector<8x3xf32>
    %5 = vector.multi_reduction <maximumf>, %4, %cst_4 [0] : vector<2x8x3xf32> to vector<8x3xf32>
    %6 = vector.shape_cast %5 : vector<8x3xf32> to vector<1x8x3xf32>
    %7 = vector.broadcast %6 : vector<1x8x3xf32> to vector<2x8x3xf32>
    %8 = arith.subf %4, %7 : vector<2x8x3xf32>
    %9 = math.exp %8 : vector<2x8x3xf32>
    %cst_5 = arith.constant dense<0.000000e+00> : vector<8x3xf32>
    %10 = vector.multi_reduction <add>, %9, %cst_5 [0] : vector<2x8x3xf32> to vector<8x3xf32>
    %11 = vector.shape_cast %10 : vector<8x3xf32> to vector<1x8x3xf32>
    %12 = vector.broadcast %11 : vector<1x8x3xf32> to vector<2x8x3xf32>
    %13 = arith.divf %9, %12 : vector<2x8x3xf32>
    %c0_6 = arith.constant 0 : index
    %c0_7 = arith.constant 0 : index
    %c0_8 = arith.constant 0 : index
    %14 = vector.load %arg3[%c0_6, %c0_7, %c0_8] : memref<2x8x3xf32, #tpu.memory_space<vmem>>, vector<2x8x3xf32>
    tpu.vector_store %arg3[%c0_6, %c0_7, %c0_8], %13 {strides = array<i32>} : memref<2x8x3xf32, #tpu.memory_space<vmem>>, vector<2x8x3xf32>,
    return
  }
  func.func @transform_0(%arg0: i32) -> (i32, i32, i32) {
    %c0_i32 = arith.constant 0 : i32
    %c0_i32_0 = arith.constant 0 : i32
    %c0_i32_1 = arith.constant 0 : i32
    return %c0_i32, %arg0, %c0_i32_0 : i32, i32, i32
  }
  func.func @transform_1(%arg0: i32) -> (i32, i32) {
    %c0_i32 = arith.constant 0 : i32
    %c0_i32_0 = arith.constant 0 : i32
    %c0_i32_1 = arith.constant 0 : i32
    return %c0_i32, %c0_i32_0 : i32, i32
  }
  func.func @transform_2(%arg0: i32) -> (i32, i32, i32) {
    %c0_i32 = arith.constant 0 : i32
    %c0_i32_0 = arith.constant 0 : i32
    %c0_i32_1 = arith.constant 0 : i32
    return %c0_i32, %arg0, %c0_i32_0 : i32, i32, i32
  }
}

</mosaic_0001>

<llo_original>
// kernel: tpu_custom_call.1
$region0: #{tpu_custom_call.1}
  #allocation0 [shape = 'u32[]', space=smem, size = 0x4, offset = 0x4, fixed_abs, tag = 'smem constant byte address 0x4 - core index']
  #allocation1 [shape = 'u32[144,128]{1,0:T(1,128)}', space=vmem, size = 0x12000, scoped, tag = 'internal scratch']
  %s0 = inlined_call_operand.vmem [shape: f32[2,16,128], index: 0, kind: input, shape index: {}]
  %s1 = inlined_call_operand.vmem [shape: f32[128,3], index: 1, kind: input, shape index: {}]
  %s2 = inlined_call_operand.vmem [shape: f32[2,16,3], index: 2, kind: output, shape index: {}]
  %s3 = sld [smem:[#allocation0]]
  $region113: #{tpu_custom_call.1} parent=0
    _
  %s5 = ssub.s32 1, %s3
  %s6 = scalar_select 0, %s5, %s3
  $region1: #{tpu_custom_call.1} parent=0
    #allocation2 [shape = 'u8[16384]{0}', space=vmem, size = 0x4000, scoped, tag = 'input window, operand 0']
    #allocation3 [shape = 'u8[16384]{0}', space=vmem, size = 0x4000, scoped, tag = 'output window, operand 0']
    loop: start=0, step=1, limit=4
    $region2: #{tpu_custom_call.1} parent=1 // loop_pre_header
      _
    $region3: #{tpu_custom_call.1} parent=1 // loop_header
      %s8 = sphi 0, %s12
      %p9 = scmp.ge.s32.totalorder %s8, 4
      %s18 = sphi 0, %s20
      %s21 = sphi 0, %s18
      %s22 = sphi 0, %s21
      %s38 = sphi 0, %s22
      %s42 = sphi 0, %s42
      %s44 = sphi 0, %s42
      %s45 = sphi 0, %s44
      %s59 = sphi 0, %s45
      %s65 = sphi 0, %s67
      %s68 = sphi 0, %s65
      %s69 = sphi 0, %s68
      %s85 = sphi 0, %s69
    $region4: #{tpu_custom_call.1} parent=1 // loop_header_branch
      %11 = sbr.rel (%p9) target = $region8
    $region5: #{tpu_custom_call.1} parent=1 // loop_body
      %s13 = ssub.s32 %s8, 1
      %s14 = ssub.s32 %s8, 2
      %s15 = sadd.s32 %s8, 1
      %s16 = ssub.s32 %s8, %s15
      %p17 = scmp.eq.s32.totalorder %s16, 0
      %s19 = sadd.s32 %s18, 1
      %s20 = scalar_select %p17, %s18, %s19
      %p23 = pneg %p17
      %p24 = scmp.eq.s32.totalorder %s8, 1
      %p25 = por %p23, %p24
      %p26 = scmp.ne.s32.totalorder %s18, %s21
      %p27 = scmp.eq.s32.totalorder %s8, 0
      %p28 = por %p26, %p27
      %p29 = scmp.ne.s32.totalorder %s18, %s21
      %p30 = scmp.eq.s32.totalorder %s13, 1
      %p31 = por %p29, %p30
      %p32 = scmp.ne.s32.totalorder %s21, %s22
      %p33 = scmp.eq.s32.totalorder %s13, 0
      %p34 = por %p32, %p33
      %p35 = scmp.ne.s32.totalorder %s21, %s22
      %p36 = scmp.eq.s32.totalorder %s14, 1
      %p37 = por %p35, %p36
      %p39 = scmp.ne.s32.totalorder %s22, %s38
      %p40 = scmp.eq.s32.totalorder %s14, 0
      %p41 = por %p39, %p40
      %s43 = sadd.s32 %s42, 1
      %p46 = scmp.eq.s32.totalorder %s8, 1
      %p47 = scmp.ne.s32.totalorder %s42, %s44
      %p48 = scmp.eq.s32.totalorder %s8, 0
      %p49 = por %p47, %p48
      %p50 = scmp.ne.s32.totalorder %s42, %s44
      %p51 = scmp.eq.s32.totalorder %s13, 1
      %p52 = por %p50, %p51
      %p53 = scmp.ne.s32.totalorder %s44, %s45
      %p54 = scmp.eq.s32.totalorder %s13, 0
      %p55 = por %p53, %p54
      %p56 = scmp.ne.s32.totalorder %s44, %s45
      %p57 = scmp.eq.s32.totalorder %s14, 1
      %p58 = por %p56, %p57
      %p60 = scmp.ne.s32.totalorder %s45, %s59
      %p61 = scmp.eq.s32.totalorder %s14, 0
      %p62 = por %p60, %p61
      %s63 = ssub.s32 %s8, %s15
      %p64 = scmp.eq.s32.totalorder %s63, 0
      %s66 = sadd.s32 %s65, 1
      %s67 = scalar_select %p64, %s65, %s66
      %p70 = pneg %p64
      %p71 = scmp.eq.s32.totalorder %s8, 1
      %p72 = por %p70, %p71
      %p73 = scmp.ne.s32.totalorder %s65, %s68
      %p74 = scmp.eq.s32.totalorder %s8, 0
      %p75 = por %p73, %p74
      %p76 = scmp.ne.s32.totalorder %s65, %s68
      %p77 = scmp.eq.s32.totalorder %s13, 1
      %p78 = por %p76, %p77
      %p79 = scmp.ne.s32.totalorder %s68, %s69
      %p80 = scmp.eq.s32.totalorder %s13, 0
      %p81 = por %p79, %p80
      %p82 = scmp.ne.s32.totalorder %s68, %s69
      %p83 = scmp.eq.s32.totalorder %s14, 1
      %p84 = por %p82, %p83
      %p86 = scmp.ne.s32.totalorder %s69, %s85
      %p87 = scmp.eq.s32.totalorder %s14, 0
      %p88 = por %p86, %p87
      %p89 = scmp.le.s32.totalorder 1, %s8
      %p90 = scmp.lt.s32.totalorder %s8, 3
      %p91 = pnand %p89, %p90
      %p92 = pneg %p91
      // Predicated region
      $region9: #{tpu_custom_call.1} parent=5 // pred_check
        _
      $region10: #{tpu_custom_call.1} parent=5 // pred_check_branch
        %94 = sbr.rel (%p91) target = $region12
      $region11: #{tpu_custom_call.1} parent=5 // pred_region
        %s95 = ssub.s32 %s8, 1
        // Predicated region
        $region13: #{tpu_custom_call.1} parent=11 // pred_check
          %p96 = pneg %p55
        $region14: #{tpu_custom_call.1} parent=11 // pred_check_branch
          %98 = sbr.rel (%p96) target = $region16
        $region15: #{tpu_custom_call.1} parent=11 // pred_region
          _
        $region16: #{tpu_custom_call.1} parent=11 // pred_fallthru
          _
      $region12: #{tpu_custom_call.1} parent=5 // pred_fallthru
        _
      %p99 = scmp.lt.s32.totalorder %s8, 2
      // Predicated region
      $region17: #{tpu_custom_call.1} parent=5 // pred_check
        %p100 = pneg %p99
      $region18: #{tpu_custom_call.1} parent=5 // pred_check_branch
        %102 = sbr.rel (%p100) target = $region20
      $region19: #{tpu_custom_call.1} parent=5 // pred_region
        // Predicated region
        $region21: #{tpu_custom_call.1} parent=19 // pred_check
          %p103 = pneg %p28
        $region22: #{tpu_custom_call.1} parent=19 // pred_check_branch
          %105 = sbr.rel (%p103) target = $region24
        $region23: #{tpu_custom_call.1} parent=19 // pred_region
          %s106 = sand.u32 %s18, 1
          %s107 = sand.u32 %s18, 1
          %s108 = smul.addr %s107, 16
          %s109 = scalar_lea.vmem [#allocation2], %s108
          %s110 = smul.addr %s8, 8
          %s111 = scalar_lea.vmem %s0, %s110
          // Predicated region
          $region25: #{tpu_custom_call.1} parent=23 // pred_check
            _
          $region26: #{tpu_custom_call.1} parent=23 // pred_check_branch
            %113 = sbr.rel (0) target = $region28
          $region27: #{tpu_custom_call.1} parent=23 // pred_region
            // Predicated region
            $region29: #{tpu_custom_call.1} parent=27 // pred_check
              _
            $region30: #{tpu_custom_call.1} parent=27 // pred_check_branch
              %115 = sbr.rel (0) target = $region32
            $region31: #{tpu_custom_call.1} parent=27 // pred_region
              // Predicated region
              $region44: #{tpu_custom_call.1} parent=31 // pred_check
                _
              $region45: #{tpu_custom_call.1} parent=31 // pred_check_branch
                %132 = sbr.rel (0) target = $region47
              $region46: #{tpu_custom_call.1} parent=31 // pred_region
                loop: start=0, step=1, limit=1
                $region48: #{tpu_custom_call.1} parent=46 // loop_pre_header
                  _
                $region49: #{tpu_custom_call.1} parent=46 // loop_header
                  %s134 = sphi 0, %s138
                  %p135 = scmp.ge.s32.totalorder %s134, 1
                  %s139 = sphi %s111, %s111
                  %s140 = sphi %s109, %s109
                $region50: #{tpu_custom_call.1} parent=46 // loop_header_branch
                  %137 = sbr.rel (%p135) target = $region54
                $region51: #{tpu_custom_call.1} parent=46 // loop_body
                  %v141 = vld [vmem:[%s139] sm:$0xff]
                  %142 = vst [vmem:[%s140] sm:$0xff] %v141
                  %v143 = vld [vmem:[%s139 + $0x10] sm:$0xff]
                  %144 = vst [vmem:[%s140 + $0x8] sm:$0xff] %v143
                $region52: #{tpu_custom_call.1} parent=46 // loop_footer
                  %s138 = sadd.s32 1, %s134
                $region53: #{tpu_custom_call.1} parent=46 // loop_footer_branch
                  %133 = sbr.rel target = $region49
                $region54: #{tpu_custom_call.1} parent=46 // loop_exit
                  _
              $region47: #{tpu_custom_call.1} parent=31 // pred_fallthru
                _
              // Predicated region
              $region55: #{tpu_custom_call.1} parent=31 // pred_check
                _
              $region56: #{tpu_custom_call.1} parent=31 // pred_check_branch
                %146 = sbr.rel target = $region58
              $region57: #{tpu_custom_call.1} parent=31 // pred_region
                _
              $region58: #{tpu_custom_call.1} parent=31 // pred_fallthru
                _
            $region32: #{tpu_custom_call.1} parent=27 // pred_fallthru
              _
            // Predicated region
            $region33: #{tpu_custom_call.1} parent=27 // pred_check
              _
            $region34: #{tpu_custom_call.1} parent=27 // pred_check_branch
              %117 = sbr.rel target = $region36
            $region35: #{tpu_custom_call.1} parent=27 // pred_region
              loop: start=0, step=1, limit=1
              $region37: #{tpu_custom_call.1} parent=35 // loop_pre_header
                _
              $region38: #{tpu_custom_call.1} parent=35 // loop_header
                %s120 = sphi 0, %s124
                %p121 = scmp.ge.s32.totalorder %s120, 1
                %s125 = sphi %s111, %s111
                %s126 = sphi %s109, %s109
              $region39: #{tpu_custom_call.1} parent=35 // loop_header_branch
                %123 = sbr.rel (%p121) target = $region43
              $region40: #{tpu_custom_call.1} parent=35 // loop_body
                %v127 = vld [vmem:[%s125] sm:$0xff]
                %128 = vst [vmem:[%s126] sm:$0xff] %v127
                %v129 = vld [vmem:[%s125 + $0x10] sm:$0xff]
                %130 = vst [vmem:[%s126 + $0x8] sm:$0xff] %v129
              $region41: #{tpu_custom_call.1} parent=35 // loop_footer
                %s124 = sadd.s32 1, %s120
              $region42: #{tpu_custom_call.1} parent=35 // loop_footer_branch
                %119 = sbr.rel target = $region38
              $region43: #{tpu_custom_call.1} parent=35 // loop_exit
                _
            $region36: #{tpu_custom_call.1} parent=27 // pred_fallthru
              _
          $region28: #{tpu_custom_call.1} parent=23 // pred_fallthru
            _
          %147 = vnop
        $region24: #{tpu_custom_call.1} parent=19 // pred_fallthru
          _
      $region20: #{tpu_custom_call.1} parent=5 // pred_fallthru
        _
      %p148 = scmp.le.s32.totalorder 1, %s8
      %p149 = scmp.lt.s32.totalorder %s8, 3
      %p150 = pnand %p148, %p149
      %p151 = pneg %p150
      // Predicated region
      $region59: #{tpu_custom_call.1} parent=5 // pred_check
        _
      $region60: #{tpu_custom_call.1} parent=5 // pred_check_branch
        %153 = sbr.rel (%p150) target = $region62
      $region61: #{tpu_custom_call.1} parent=5 // pred_region
        %s154 = ssub.s32 %s8, 1
        %s155 = sand.u32 %s21, 1
        %s156 = sand.u32 %s21, 1
        %s157 = smul.addr %s156, 16
        %s158 = scalar_lea.vmem [#allocation2], %s157
        // Predicated region
        $region63: #{tpu_custom_call.1} parent=61 // pred_check
          %p159 = pneg %p34
        $region64: #{tpu_custom_call.1} parent=61 // pred_check_branch
          %161 = sbr.rel (%p159) target = $region66
        $region65: #{tpu_custom_call.1} parent=61 // pred_region
          _
        $region66: #{tpu_custom_call.1} parent=61 // pred_fallthru
          _
        %s162 = sand.u32 %s21, 1
        %s163 = sand.u32 %s21, 1
        %s164 = smul.addr %s163, 16
        %s165 = scalar_lea.vmem [#allocation2], %s164
        %p166 = pneg %p34
        %p167 = pneg %p31
        %p168 = pneg %p55
        %p169 = pneg %p52
        %p170 = pneg %p81
        %p171 = pneg %p78
        %s172 = sand.u32 %s68, 1
        %s173 = sand.u32 %s68, 1
        %s174 = smul.addr %s173, 16
        %s175 = scalar_lea.vmem [#allocation3], %s174
        %v176 = vld [vmem:[%s158] sm:$0xff]
        %v177 = vld [vmem:[%s158 + $0x8] sm:$0xff]
        %v178 = vld [vmem:[%s1] sm:$0xff]
        %v179 = vld [vmem:[%s1 + $0x8] sm:$0xff]
        %v180 = vld [vmem:[%s1 + $0x10] sm:$0xff]
        %v181 = vld [vmem:[%s1 + $0x18] sm:$0xff]
        %v182 = vld [vmem:[%s1 + $0x20] sm:$0xff]
        %v183 = vld [vmem:[%s1 + $0x28] sm:$0xff]
        %v184 = vld [vmem:[%s1 + $0x30] sm:$0xff]
        %v185 = vld [vmem:[%s1 + $0x38] sm:$0xff]
        %v186 = vld [vmem:[%s1 + $0x40] sm:$0xff]
        %v187 = vld [vmem:[%s1 + $0x48] sm:$0xff]
        %v188 = vld [vmem:[%s1 + $0x50] sm:$0xff]
        %v189 = vld [vmem:[%s1 + $0x58] sm:$0xff]
        %v190 = vld [vmem:[%s1 + $0x60] sm:$0xff]
        %v191 = vld [vmem:[%s1 + $0x68] sm:$0xff]
        %v192 = vld [vmem:[%s1 + $0x70] sm:$0xff]
        %v193 = vld [vmem:[%s1 + $0x78] sm:$0xff]
        %194 = vmatprep.subr.mxu0 0.0
        %v195 = vand.u32 %v178, 4294901760
        %196 = vmatpush1.msra.mxu0 %v195
        %197 = vmatprep.subr.mxu0 0.0
        %v198 = vand.u32 %v179, 4294901760
        %199 = vmatpush1.msra.mxu0 %v198
        %200 = vmatprep.subr.mxu0 0.0
        %v201 = vand.u32 %v180, 4294901760
        %202 = vmatpush1.msra.mxu0 %v201
        %203 = vmatprep.subr.mxu0 0.0
        %v204 = vand.u32 %v181, 4294901760
        %205 = vmatpush1.msra.mxu0 %v204
        %206 = vmatprep.subr.mxu0 0.0
        %v207 = vand.u32 %v182, 4294901760
        %208 = vmatpush1.msra.mxu0 %v207
        %209 = vmatprep.subr.mxu0 0.0
        %v210 = vand.u32 %v183, 4294901760
        %211 = vmatpush1.msra.mxu0 %v210
        %212 = vmatprep.subr.mxu0 0.0
        %v213 = vand.u32 %v184, 4294901760
        %214 = vmatpush1.msra.mxu0 %v213
        %215 = vmatprep.subr.mxu0 0.0
        %v216 = vand.u32 %v185, 4294901760
        %217 = vmatpush1.msra.mxu0 %v216
        %218 = vmatprep.subr.mxu0 0.0
        %v219 = vand.u32 %v186, 4294901760
        %220 = vmatpush1.msra.mxu0 %v219
        %221 = vmatprep.subr.mxu0 0.0
        %v222 = vand.u32 %v187, 4294901760
        %223 = vmatpush1.msra.mxu0 %v222
        %224 = vmatprep.subr.mxu0 0.0
        %v225 = vand.u32 %v188, 4294901760
        %226 = vmatpush1.msra.mxu0 %v225
        %227 = vmatprep.subr.mxu0 0.0
        %v228 = vand.u32 %v189, 4294901760
        %229 = vmatpush1.msra.mxu0 %v228
        %230 = vmatprep.subr.mxu0 0.0
        %v231 = vand.u32 %v190, 4294901760
        %232 = vmatpush1.msra.mxu0 %v231
        %233 = vmatprep.subr.mxu0 0.0
        %v234 = vand.u32 %v191, 4294901760
        %235 = vmatpush1.msra.mxu0 %v234
        %236 = vmatprep.subr.mxu0 0.0
        %v237 = vand.u32 %v192, 4294901760
        %238 = vmatpush1.msra.mxu0 %v237
        %239 = vmatprep.subr.mxu0 0.0
        %v240 = vand.u32 %v193, 4294901760
        %241 = vmatpush1.msra.mxu0 %v240
        %242 = vmatprep.subr.mxu0 0.0
        %243 = vmatpush1.msra.mxu0 0.0
        %244 = vmatprep.subr.mxu0 0.0
        %245 = vmatpush1.msra.mxu0 0.0
        %246 = vmatprep.subr.mxu0 0.0
        %247 = vmatpush1.msra.mxu0 0.0
        %248 = vmatprep.subr.mxu0 0.0
        %249 = vmatpush1.msra.mxu0 0.0
        %250 = vmatprep.subr.mxu0 0.0
        %251 = vmatpush1.msra.mxu0 0.0
        %252 = vmatprep.subr.mxu0 0.0
        %253 = vmatpush1.msra.mxu0 0.0
        %254 = vmatprep.subr.mxu0 0.0
        %255 = vmatpush1.msra.mxu0 0.0
        %256 = vmatprep.subr.mxu0 0.0
        %257 = vmatpush1.msra.mxu0 0.0
        %258 = vmatprep.subr.mxu0 0.0
        %259 = vmatpush1.msra.mxu0 0.0
        %260 = vmatprep.subr.mxu0 0.0
        %261 = vmatpush1.msra.mxu0 0.0
        %262 = vmatprep.subr.mxu0 0.0
        %263 = vmatpush1.msra.mxu0 0.0
        %264 = vmatprep.subr.mxu0 0.0
        %265 = vmatpush1.msra.mxu0 0.0
        %266 = vmatprep.subr.mxu0 0.0
        %267 = vmatpush1.msra.mxu0 0.0
        %268 = vmatprep.subr.mxu0 0.0
        %269 = vmatpush1.msra.mxu0 0.0
        %270 = vmatprep.subr.mxu0 0.0
        %271 = vmatpush1.msra.mxu0 0.0
        %272 = vmatprep.subr.mxu0 0.0
        %273 = vmatpush1.msra.mxu0 0.0
        %274 = vmatprep.mubr.f32.mxu0 0.0
        %v275 = vand.u32 %v176, 4294901760
        %v276 = vsub.f32 %v176, %v275
        %v277 = vand.u32 %v276, 4294901760
        %v278 = vsub.f32 %v276, %v277
        %v279 = vand.u32 %v278, 4294901760
        %280 = vmatmul.mubr.f32.gmra.mrb[0].mxu0 %v279
        %v281 = vpop.f32.mrb[0].mxu0
        %v282 = vadd.f32 0.0, %v281
        %v283 = vpop.f32.mrb[0].mxu0
        %284 = vmatprep.mubr.f32.mxu0 0.0
        %v285 = vand.u32 %v177, 4294901760
        %v286 = vsub.f32 %v177, %v285
        %v287 = vand.u32 %v286, 4294901760
        %v288 = vsub.f32 %v286, %v287
        %v289 = vand.u32 %v288, 4294901760
        %290 = vmatmul.mubr.f32.gmra.mrb[0].mxu0 %v289
        %v291 = vpop.f32.mrb[0].mxu0
        %v292 = vadd.f32 0.0, %v291
        %v293 = vpop.f32.mrb[0].mxu0
        %294 = vdwg.mxu0
        %295 = vmatprep.subr.mxu0 0.0
        %v296 = vand.u32 %v178, 4294901760
        %v297 = vsub.f32 %v178, %v296
        %v298 = vand.u32 %v297, 4294901760
        %v299 = vsub.f32 %v297, %v298
        %v300 = vand.u32 %v299, 4294901760
        %301 = vmatpush1.msra.mxu0 %v300
        %302 = vmatprep.subr.mxu0 0.0
        %v303 = vand.u32 %v179, 4294901760
        %v304 = vsub.f32 %v179, %v303
        %v305 = vand.u32 %v304, 4294901760
        %v306 = vsub.f32 %v304, %v305
        %v307 = vand.u32 %v306, 4294901760
        %308 = vmatpush1.msra.mxu0 %v307
        %309 = vmatprep.subr.mxu0 0.0
        %v310 = vand.u32 %v180, 4294901760
        %v311 = vsub.f32 %v180, %v310
        %v312 = vand.u32 %v311, 4294901760
        %v313 = vsub.f32 %v311, %v312
        %v314 = vand.u32 %v313, 4294901760
        %315 = vmatpush1.msra.mxu0 %v314
        %316 = vmatprep.subr.mxu0 0.0
        %v317 = vand.u32 %v181, 4294901760
        %v318 = vsub.f32 %v181, %v317
        %v319 = vand.u32 %v318, 4294901760
        %v320 = vsub.f32 %v318, %v319
        %v321 = vand.u32 %v320, 4294901760
        %322 = vmatpush1.msra.mxu0 %v321
        %323 = vmatprep.subr.mxu0 0.0
        %v324 = vand.u32 %v182, 4294901760
        %v325 = vsub.f32 %v182, %v324
        %v326 = vand.u32 %v325, 4294901760
        %v327 = vsub.f32 %v325, %v326
        %v328 = vand.u32 %v327, 4294901760
        %329 = vmatpush1.msra.mxu0 %v328
        %330 = vmatprep.subr.mxu0 0.0
        %v331 = vand.u32 %v183, 4294901760
        %v332 = vsub.f32 %v183, %v331
        %v333 = vand.u32 %v332, 4294901760
        %v334 = vsub.f32 %v332, %v333
        %v335 = vand.u32 %v334, 4294901760
        %336 = vmatpush1.msra.mxu0 %v335
        %337 = vmatprep.subr.mxu0 0.0
        %v338 = vand.u32 %v184, 4294901760
        %v339 = vsub.f32 %v184, %v338
        %v340 = vand.u32 %v339, 4294901760
        %v341 = vsub.f32 %v339, %v340
        %v342 = vand.u32 %v341, 4294901760
        %343 = vmatpush1.msra.mxu0 %v342
        %344 = vmatprep.subr.mxu0 0.0
        %v345 = vand.u32 %v185, 4294901760
        %v346 = vsub.f32 %v185, %v345
        %v347 = vand.u32 %v346, 4294901760
        %v348 = vsub.f32 %v346, %v347
        %v349 = vand.u32 %v348, 4294901760
        %350 = vmatpush1.msra.mxu0 %v349
        %351 = vmatprep.subr.mxu0 0.0
        %v352 = vand.u32 %v186, 4294901760
        %v353 = vsub.f32 %v186, %v352
        %v354 = vand.u32 %v353, 4294901760
        %v355 = vsub.f32 %v353, %v354
        %v356 = vand.u32 %v355, 4294901760
        %357 = vmatpush1.msra.mxu0 %v356
        %358 = vmatprep.subr.mxu0 0.0
        %v359 = vand.u32 %v187, 4294901760
        %v360 = vsub.f32 %v187, %v359
        %v361 = vand.u32 %v360, 4294901760
        %v362 = vsub.f32 %v360, %v361
        %v363 = vand.u32 %v362, 4294901760
        %364 = vmatpush1.msra.mxu0 %v363
        %365 = vmatprep.subr.mxu0 0.0
        %v366 = vand.u32 %v188, 4294901760
        %v367 = vsub.f32 %v188, %v366
        %v368 = vand.u32 %v367, 4294901760
        %v369 = vsub.f32 %v367, %v368
        %v370 = vand.u32 %v369, 4294901760
        %371 = vmatpush1.msra.mxu0 %v370
        %372 = vmatprep.subr.mxu0 0.0
        %v373 = vand.u32 %v189, 4294901760
        %v374 = vsub.f32 %v189, %v373
        %v375 = vand.u32 %v374, 4294901760
        %v376 = vsub.f32 %v374, %v375
        %v377 = vand.u32 %v376, 4294901760
        %378 = vmatpush1.msra.mxu0 %v377
        %379 = vmatprep.subr.mxu0 0.0
        %v380 = vand.u32 %v190, 4294901760
        %v381 = vsub.f32 %v190, %v380
        %v382 = vand.u32 %v381, 4294901760
        %v383 = vsub.f32 %v381, %v382
        %v384 = vand.u32 %v383, 4294901760
        %385 = vmatpush1.msra.mxu0 %v384
        %386 = vmatprep.subr.mxu0 0.0
        %v387 = vand.u32 %v191, 4294901760
        %v388 = vsub.f32 %v191, %v387
        %v389 = vand.u32 %v388, 4294901760
        %v390 = vsub.f32 %v388, %v389
        %v391 = vand.u32 %v390, 4294901760
        %392 = vmatpush1.msra.mxu0 %v391
        %393 = vmatprep.subr.mxu0 0.0
        %v394 = vand.u32 %v192, 4294901760
        %v395 = vsub.f32 %v192, %v394
        %v396 = vand.u32 %v395, 4294901760
        %v397 = vsub.f32 %v395, %v396
        %v398 = vand.u32 %v397, 4294901760
        %399 = vmatpush1.msra.mxu0 %v398
        %400 = vmatprep.subr.mxu0 0.0
        %v401 = vand.u32 %v193, 4294901760
        %v402 = vsub.f32 %v193, %v401
        %v403 = vand.u32 %v402, 4294901760
        %v404 = vsub.f32 %v402, %v403
        %v405 = vand.u32 %v404, 4294901760
        %406 = vmatpush1.msra.mxu0 %v405
        %407 = vmatprep.subr.mxu0 0.0
        %408 = vmatpush1.msra.mxu0 0.0
        %409 = vmatprep.subr.mxu0 0.0
        %410 = vmatpush1.msra.mxu0 0.0
        %411 = vmatprep.subr.mxu0 0.0
        %412 = vmatpush1.msra.mxu0 0.0
        %413 = vmatprep.subr.mxu0 0.0
        %414 = vmatpush1.msra.mxu0 0.0
        %415 = vmatprep.subr.mxu0 0.0
        %416 = vmatpush1.msra.mxu0 0.0
        %417 = vmatprep.subr.mxu0 0.0
        %418 = vmatpush1.msra.mxu0 0.0
        %419 = vmatprep.subr.mxu0 0.0
        %420 = vmatpush1.msra.mxu0 0.0
        %421 = vmatprep.subr.mxu0 0.0
        %422 = vmatpush1.msra.mxu0 0.0
        %423 = vmatprep.subr.mxu0 0.0
        %424 = vmatpush1.msra.mxu0 0.0
        %425 = vmatprep.subr.mxu0 0.0
        %426 = vmatpush1.msra.mxu0 0.0
        %427 = vmatprep.subr.mxu0 0.0
        %428 = vmatpush1.msra.mxu0 0.0
        %429 = vmatprep.subr.mxu0 0.0
        %430 = vmatpush1.msra.mxu0 0.0
        %431 = vmatprep.subr.mxu0 0.0
        %432 = vmatpush1.msra.mxu0 0.0
        %433 = vmatprep.subr.mxu0 0.0
        %434 = vmatpush1.msra.mxu0 0.0
        %435 = vmatprep.subr.mxu0 0.0
        %436 = vmatpush1.msra.mxu0 0.0
        %437 = vmatprep.subr.mxu0 0.0
        %438 = vmatpush1.msra.mxu0 0.0
        %439 = vmatprep.mubr.f32.mxu0 0.0
        %v440 = vand.u32 %v176, 4294901760
        %441 = vmatmul.mubr.f32.gmra.mrb[0].mxu0 %v440
        %v442 = vpop.f32.mrb[0].mxu0
        %v443 = vadd.f32 %v282, %v442
        %v444 = vpop.f32.mrb[0].mxu0
        %445 = vmatprep.mubr.f32.mxu0 0.0
        %v446 = vand.u32 %v177, 4294901760
        %447 = vmatmul.mubr.f32.gmra.mrb[0].mxu0 %v446
        %v448 = vpop.f32.mrb[0].mxu0
        %v449 = vadd.f32 %v292, %v448
        %v450 = vpop.f32.mrb[0].mxu0
        %451 = vdwg.mxu0
        %452 = vmatprep.subr.mxu0 0.0
        %v453 = vand.u32 %v178, 4294901760
        %v454 = vsub.f32 %v178, %v453
        %455 = vmatpush1.msra.mxu0 %v454
        %456 = vmatprep.subr.mxu0 0.0
        %v457 = vand.u32 %v179, 4294901760
        %v458 = vsub.f32 %v179, %v457
        %459 = vmatpush1.msra.mxu0 %v458
        %460 = vmatprep.subr.mxu0 0.0
        %v461 = vand.u32 %v180, 4294901760
        %v462 = vsub.f32 %v180, %v461
        %463 = vmatpush1.msra.mxu0 %v462
        %464 = vmatprep.subr.mxu0 0.0
        %v465 = vand.u32 %v181, 4294901760
        %v466 = vsub.f32 %v181, %v465
        %467 = vmatpush1.msra.mxu0 %v466
        %468 = vmatprep.subr.mxu0 0.0
        %v469 = vand.u32 %v182, 4294901760
        %v470 = vsub.f32 %v182, %v469
        %471 = vmatpush1.msra.mxu0 %v470
        %472 = vmatprep.subr.mxu0 0.0
        %v473 = vand.u32 %v183, 4294901760
        %v474 = vsub.f32 %v183, %v473
        %475 = vmatpush1.msra.mxu0 %v474
        %476 = vmatprep.subr.mxu0 0.0
        %v477 = vand.u32 %v184, 4294901760
        %v478 = vsub.f32 %v184, %v477
        %479 = vmatpush1.msra.mxu0 %v478
        %480 = vmatprep.subr.mxu0 0.0
        %v481 = vand.u32 %v185, 4294901760
        %v482 = vsub.f32 %v185, %v481
        %483 = vmatpush1.msra.mxu0 %v482
        %484 = vmatprep.subr.mxu0 0.0
        %v485 = vand.u32 %v186, 4294901760
        %v486 = vsub.f32 %v186, %v485
        %487 = vmatpush1.msra.mxu0 %v486
        %488 = vmatprep.subr.mxu0 0.0
        %v489 = vand.u32 %v187, 4294901760
        %v490 = vsub.f32 %v187, %v489
        %491 = vmatpush1.msra.mxu0 %v490
        %492 = vmatprep.subr.mxu0 0.0
        %v493 = vand.u32 %v188, 4294901760
        %v494 = vsub.f32 %v188, %v493
        %495 = vmatpush1.msra.mxu0 %v494
        %496 = vmatprep.subr.mxu0 0.0
        %v497 = vand.u32 %v189, 4294901760
        %v498 = vsub.f32 %v189, %v497
        %499 = vmatpush1.msra.mxu0 %v498
        %500 = vmatprep.subr.mxu0 0.0
        %v501 = vand.u32 %v190, 4294901760
        %v502 = vsub.f32 %v190, %v501
        %503 = vmatpush1.msra.mxu0 %v502
        %504 = vmatprep.subr.mxu0 0.0
        %v505 = vand.u32 %v191, 4294901760
        %v506 = vsub.f32 %v191, %v505
        %507 = vmatpush1.msra.mxu0 %v506
        %508 = vmatprep.subr.mxu0 0.0
        %v509 = vand.u32 %v192, 4294901760
        %v510 = vsub.f32 %v192, %v509
        %511 = vmatpush1.msra.mxu0 %v510
        %512 = vmatprep.subr.mxu0 0.0
        %v513 = vand.u32 %v193, 4294901760
        %v514 = vsub.f32 %v193, %v513
        %515 = vmatpush1.msra.mxu0 %v514
        %516 = vmatprep.subr.mxu0 0.0
        %517 = vmatpush1.msra.mxu0 0.0
        %518 = vmatprep.subr.mxu0 0.0
        %519 = vmatpush1.msra.mxu0 0.0
        %520 = vmatprep.subr.mxu0 0.0
        %521 = vmatpush1.msra.mxu0 0.0
        %522 = vmatprep.subr.mxu0 0.0
        %523 = vmatpush1.msra.mxu0 0.0
        %524 = vmatprep.subr.mxu0 0.0
        %525 = vmatpush1.msra.mxu0 0.0
        %526 = vmatprep.subr.mxu0 0.0
        %527 = vmatpush1.msra.mxu0 0.0
        %528 = vmatprep.subr.mxu0 0.0
        %529 = vmatpush1.msra.mxu0 0.0
        %530 = vmatprep.subr.mxu0 0.0
        %531 = vmatpush1.msra.mxu0 0.0
        %532 = vmatprep.subr.mxu0 0.0
        %533 = vmatpush1.msra.mxu0 0.0
        %534 = vmatprep.subr.mxu0 0.0
        %535 = vmatpush1.msra.mxu0 0.0
        %536 = vmatprep.subr.mxu0 0.0
        %537 = vmatpush1.msra.mxu0 0.0
        %538 = vmatprep.subr.mxu0 0.0
        %539 = vmatpush1.msra.mxu0 0.0
        %540 = vmatprep.subr.mxu0 0.0
        %541 = vmatpush1.msra.mxu0 0.0
        %542 = vmatprep.subr.mxu0 0.0
        %543 = vmatpush1.msra.mxu0 0.0
        %544 = vmatprep.subr.mxu0 0.0
        %545 = vmatpush1.msra.mxu0 0.0
        %546 = vmatprep.subr.mxu0 0.0
        %547 = vmatpush1.msra.mxu0 0.0
        %548 = vmatprep.mubr.f32.mxu0 0.0
        %v549 = vand.u32 %v176, 4294901760
        %v550 = vsub.f32 %v176, %v549
        %551 = vmatmul.mubr.f32.gmra.mrb[0].mxu0 %v550
        %v552 = vpop.f32.mrb[0].mxu0
        %v553 = vadd.f32 %v443, %v552
        %v554 = vpop.f32.mrb[0].mxu0
        %555 = vmatprep.mubr.f32.mxu0 0.0
        %v556 = vand.u32 %v177, 4294901760
        %v557 = vsub.f32 %v177, %v556
        %558 = vmatmul.mubr.f32.gmra.mrb[0].mxu0 %v557
        %v559 = vpop.f32.mrb[0].mxu0
        %v560 = vadd.f32 %v449, %v559
        %v561 = vpop.f32.mrb[0].mxu0
        %562 = vdwg.mxu0
        %563 = vmatprep.subr.mxu0 0.0
        %v564 = vand.u32 %v178, 4294901760
        %565 = vmatpush1.msra.mxu0 %v564
        %566 = vmatprep.subr.mxu0 0.0
        %v567 = vand.u32 %v179, 4294901760
        %568 = vmatpush1.msra.mxu0 %v567
        %569 = vmatprep.subr.mxu0 0.0
        %v570 = vand.u32 %v180, 4294901760
        %571 = vmatpush1.msra.mxu0 %v570
        %572 = vmatprep.subr.mxu0 0.0
        %v573 = vand.u32 %v181, 4294901760
        %574 = vmatpush1.msra.mxu0 %v573
        %575 = vmatprep.subr.mxu0 0.0
        %v576 = vand.u32 %v182, 4294901760
        %577 = vmatpush1.msra.mxu0 %v576
        %578 = vmatprep.subr.mxu0 0.0
        %v579 = vand.u32 %v183, 4294901760
        %580 = vmatpush1.msra.mxu0 %v579
        %581 = vmatprep.subr.mxu0 0.0
        %v582 = vand.u32 %v184, 4294901760
        %583 = vmatpush1.msra.mxu0 %v582
        %584 = vmatprep.subr.mxu0 0.0
        %v585 = vand.u32 %v185, 4294901760
        %586 = vmatpush1.msra.mxu0 %v585
        %587 = vmatprep.subr.mxu0 0.0
        %v588 = vand.u32 %v186, 4294901760
        %589 = vmatpush1.msra.mxu0 %v588
        %590 = vmatprep.subr.mxu0 0.0
        %v591 = vand.u32 %v187, 4294901760
        %592 = vmatpush1.msra.mxu0 %v591
        %593 = vmatprep.subr.mxu0 0.0
        %v594 = vand.u32 %v188, 4294901760
        %595 = vmatpush1.msra.mxu0 %v594
        %596 = vmatprep.subr.mxu0 0.0
        %v597 = vand.u32 %v189, 4294901760
        %598 = vmatpush1.msra.mxu0 %v597
        %599 = vmatprep.subr.mxu0 0.0
        %v600 = vand.u32 %v190, 4294901760
        %601 = vmatpush1.msra.mxu0 %v600
        %602 = vmatprep.subr.mxu0 0.0
        %v603 = vand.u32 %v191, 4294901760
        %604 = vmatpush1.msra.mxu0 %v603
        %605 = vmatprep.subr.mxu0 0.0
        %v606 = vand.u32 %v192, 4294901760
        %607 = vmatpush1.msra.mxu0 %v606
        %608 = vmatprep.subr.mxu0 0.0
        %v609 = vand.u32 %v193, 4294901760
        %610 = vmatpush1.msra.mxu0 %v609
        %611 = vmatprep.subr.mxu0 0.0
        %612 = vmatpush1.msra.mxu0 0.0
        %613 = vmatprep.subr.mxu0 0.0
        %614 = vmatpush1.msra.mxu0 0.0
        %615 = vmatprep.subr.mxu0 0.0
        %616 = vmatpush1.msra.mxu0 0.0
        %617 = vmatprep.subr.mxu0 0.0
        %618 = vmatpush1.msra.mxu0 0.0
        %619 = vmatprep.subr.mxu0 0.0
        %620 = vmatpush1.msra.mxu0 0.0
        %621 = vmatprep.subr.mxu0 0.0
        %622 = vmatpush1.msra.mxu0 0.0
        %623 = vmatprep.subr.mxu0 0.0
        %624 = vmatpush1.msra.mxu0 0.0
        %625 = vmatprep.subr.mxu0 0.0
        %626 = vmatpush1.msra.mxu0 0.0
        %627 = vmatprep.subr.mxu0 0.0
        %628 = vmatpush1.msra.mxu0 0.0
        %629 = vmatprep.subr.mxu0 0.0
        %630 = vmatpush1.msra.mxu0 0.0
        %631 = vmatprep.subr.mxu0 0.0
        %632 = vmatpush1.msra.mxu0 0.0
        %633 = vmatprep.subr.mxu0 0.0
        %634 = vmatpush1.msra.mxu0 0.0
        %635 = vmatprep.subr.mxu0 0.0
        %636 = vmatpush1.msra.mxu0 0.0
        %637 = vmatprep.subr.mxu0 0.0
        %638 = vmatpush1.msra.mxu0 0.0
        %639 = vmatprep.subr.mxu0 0.0
        %640 = vmatpush1.msra.mxu0 0.0
        %641 = vmatprep.subr.mxu0 0.0
        %642 = vmatpush1.msra.mxu0 0.0
        %643 = vmatprep.mubr.f32.mxu0 0.0
        %v644 = vand.u32 %v176, 4294901760
        %v645 = vsub.f32 %v176, %v644
        %v646 = vand.u32 %v645, 4294901760
        %647 = vmatmul.mubr.f32.gmra.mrb[0].mxu0 %v646
        %v648 = vpop.f32.mrb[0].mxu0
        %v649 = vadd.f32 %v553, %v648
        %v650 = vpop.f32.mrb[0].mxu0
        %651 = vmatprep.mubr.f32.mxu0 0.0
        %v652 = vand.u32 %v177, 4294901760
        %v653 = vsub.f32 %v177, %v652
        %v654 = vand.u32 %v653, 4294901760
        %655 = vmatmul.mubr.f32.gmra.mrb[0].mxu0 %v654
        %v656 = vpop.f32.mrb[0].mxu0
        %v657 = vadd.f32 %v560, %v656
        %v658 = vpop.f32.mrb[0].mxu0
        %659 = vdwg.mxu0
        %660 = vmatprep.subr.mxu0 0.0
        %v661 = vand.u32 %v178, 4294901760
        %v662 = vsub.f32 %v178, %v661
        %v663 = vand.u32 %v662, 4294901760
        %664 = vmatpush1.msra.mxu0 %v663
        %665 = vmatprep.subr.mxu0 0.0
        %v666 = vand.u32 %v179, 4294901760
        %v667 = vsub.f32 %v179, %v666
        %v668 = vand.u32 %v667, 4294901760
        %669 = vmatpush1.msra.mxu0 %v668
        %670 = vmatprep.subr.mxu0 0.0
        %v671 = vand.u32 %v180, 4294901760
        %v672 = vsub.f32 %v180, %v671
        %v673 = vand.u32 %v672, 4294901760
        %674 = vmatpush1.msra.mxu0 %v673
        %675 = vmatprep.subr.mxu0 0.0
        %v676 = vand.u32 %v181, 4294901760
        %v677 = vsub.f32 %v181, %v676
        %v678 = vand.u32 %v677, 4294901760
        %679 = vmatpush1.msra.mxu0 %v678
        %680 = vmatprep.subr.mxu0 0.0
        %v681 = vand.u32 %v182, 4294901760
        %v682 = vsub.f32 %v182, %v681
        %v683 = vand.u32 %v682, 4294901760
        %684 = vmatpush1.msra.mxu0 %v683
        %685 = vmatprep.subr.mxu0 0.0
        %v686 = vand.u32 %v183, 4294901760
        %v687 = vsub.f32 %v183, %v686
        %v688 = vand.u32 %v687, 4294901760
        %689 = vmatpush1.msra.mxu0 %v688
        %690 = vmatprep.subr.mxu0 0.0
        %v691 = vand.u32 %v184, 4294901760
        %v692 = vsub.f32 %v184, %v691
        %v693 = vand.u32 %v692, 4294901760
        %694 = vmatpush1.msra.mxu0 %v693
        %695 = vmatprep.subr.mxu0 0.0
        %v696 = vand.u32 %v185, 4294901760
        %v697 = vsub.f32 %v185, %v696
        %v698 = vand.u32 %v697, 4294901760
        %699 = vmatpush1.msra.mxu0 %v698
        %700 = vmatprep.subr.mxu0 0.0
        %v701 = vand.u32 %v186, 4294901760
        %v702 = vsub.f32 %v186, %v701
        %v703 = vand.u32 %v702, 4294901760
        %704 = vmatpush1.msra.mxu0 %v703
        %705 = vmatprep.subr.mxu0 0.0
        %v706 = vand.u32 %v187, 4294901760
        %v707 = vsub.f32 %v187, %v706
        %v708 = vand.u32 %v707, 4294901760
        %709 = vmatpush1.msra.mxu0 %v708
        %710 = vmatprep.subr.mxu0 0.0
        %v711 = vand.u32 %v188, 4294901760
        %v712 = vsub.f32 %v188, %v711
        %v713 = vand.u32 %v712, 4294901760
        %714 = vmatpush1.msra.mxu0 %v713
        %715 = vmatprep.subr.mxu0 0.0
        %v716 = vand.u32 %v189, 4294901760
        %v717 = vsub.f32 %v189, %v716
        %v718 = vand.u32 %v717, 4294901760
        %719 = vmatpush1.msra.mxu0 %v718
        %720 = vmatprep.subr.mxu0 0.0
        %v721 = vand.u32 %v190, 4294901760
        %v722 = vsub.f32 %v190, %v721
        %v723 = vand.u32 %v722, 4294901760
        %724 = vmatpush1.msra.mxu0 %v723
        %725 = vmatprep.subr.mxu0 0.0
        %v726 = vand.u32 %v191, 4294901760
        %v727 = vsub.f32 %v191, %v726
        %v728 = vand.u32 %v727, 4294901760
        %729 = vmatpush1.msra.mxu0 %v728
        %730 = vmatprep.subr.mxu0 0.0
        %v731 = vand.u32 %v192, 4294901760
        %v732 = vsub.f32 %v192, %v731
        %v733 = vand.u32 %v732, 4294901760
        %734 = vmatpush1.msra.mxu0 %v733
        %735 = vmatprep.subr.mxu0 0.0
        %v736 = vand.u32 %v193, 4294901760
        %v737 = vsub.f32 %v193, %v736
        %v738 = vand.u32 %v737, 4294901760
        %739 = vmatpush1.msra.mxu0 %v738
        %740 = vmatprep.subr.mxu0 0.0
        %741 = vmatpush1.msra.mxu0 0.0
        %742 = vmatprep.subr.mxu0 0.0
        %743 = vmatpush1.msra.mxu0 0.0
        %744 = vmatprep.subr.mxu0 0.0
        %745 = vmatpush1.msra.mxu0 0.0
        %746 = vmatprep.subr.mxu0 0.0
        %747 = vmatpush1.msra.mxu0 0.0
        %748 = vmatprep.subr.mxu0 0.0
        %749 = vmatpush1.msra.mxu0 0.0
        %750 = vmatprep.subr.mxu0 0.0
        %751 = vmatpush1.msra.mxu0 0.0
        %752 = vmatprep.subr.mxu0 0.0
        %753 = vmatpush1.msra.mxu0 0.0
        %754 = vmatprep.subr.mxu0 0.0
        %755 = vmatpush1.msra.mxu0 0.0
        %756 = vmatprep.subr.mxu0 0.0
        %757 = vmatpush1.msra.mxu0 0.0
        %758 = vmatprep.subr.mxu0 0.0
        %759 = vmatpush1.msra.mxu0 0.0
        %760 = vmatprep.subr.mxu0 0.0
        %761 = vmatpush1.msra.mxu0 0.0
        %762 = vmatprep.subr.mxu0 0.0
        %763 = vmatpush1.msra.mxu0 0.0
        %764 = vmatprep.subr.mxu0 0.0
        %765 = vmatpush1.msra.mxu0 0.0
        %766 = vmatprep.subr.mxu0 0.0
        %767 = vmatpush1.msra.mxu0 0.0
        %768 = vmatprep.subr.mxu0 0.0
        %769 = vmatpush1.msra.mxu0 0.0
        %770 = vmatprep.subr.mxu0 0.0
        %771 = vmatpush1.msra.mxu0 0.0
        %772 = vmatprep.mubr.f32.mxu0 0.0
        %v773 = vand.u32 %v176, 4294901760
        %774 = vmatmul.mubr.f32.gmra.mrb[0].mxu0 %v773
        %v775 = vpop.f32.mrb[0].mxu0
        %v776 = vadd.f32 %v649, %v775
        %v777 = vpop.f32.mrb[0].mxu0
        %778 = vmatprep.mubr.f32.mxu0 0.0
        %v779 = vand.u32 %v177, 4294901760
        %780 = vmatmul.mubr.f32.gmra.mrb[0].mxu0 %v779
        %v781 = vpop.f32.mrb[0].mxu0
        %v782 = vadd.f32 %v657, %v781
        %v783 = vpop.f32.mrb[0].mxu0
        %784 = vdwg.mxu0
        %785 = vmatprep.subr.mxu0 0.0
        %v786 = vand.u32 %v178, 4294901760
        %787 = vmatpush1.msra.mxu0 %v786
        %788 = vmatprep.subr.mxu0 0.0
        %v789 = vand.u32 %v179, 4294901760
        %790 = vmatpush1.msra.mxu0 %v789
        %791 = vmatprep.subr.mxu0 0.0
        %v792 = vand.u32 %v180, 4294901760
        %793 = vmatpush1.msra.mxu0 %v792
        %794 = vmatprep.subr.mxu0 0.0
        %v795 = vand.u32 %v181, 4294901760
        %796 = vmatpush1.msra.mxu0 %v795
        %797 = vmatprep.subr.mxu0 0.0
        %v798 = vand.u32 %v182, 4294901760
        %799 = vmatpush1.msra.mxu0 %v798
        %800 = vmatprep.subr.mxu0 0.0
        %v801 = vand.u32 %v183, 4294901760
        %802 = vmatpush1.msra.mxu0 %v801
        %803 = vmatprep.subr.mxu0 0.0
        %v804 = vand.u32 %v184, 4294901760
        %805 = vmatpush1.msra.mxu0 %v804
        %806 = vmatprep.subr.mxu0 0.0
        %v807 = vand.u32 %v185, 4294901760
        %808 = vmatpush1.msra.mxu0 %v807
        %809 = vmatprep.subr.mxu0 0.0
        %v810 = vand.u32 %v186, 4294901760
        %811 = vmatpush1.msra.mxu0 %v810
        %812 = vmatprep.subr.mxu0 0.0
        %v813 = vand.u32 %v187, 4294901760
        %814 = vmatpush1.msra.mxu0 %v813
        %815 = vmatprep.subr.mxu0 0.0
        %v816 = vand.u32 %v188, 4294901760
        %817 = vmatpush1.msra.mxu0 %v816
        %818 = vmatprep.subr.mxu0 0.0
        %v819 = vand.u32 %v189, 4294901760
        %820 = vmatpush1.msra.mxu0 %v819
        %821 = vmatprep.subr.mxu0 0.0
        %v822 = vand.u32 %v190, 4294901760
        %823 = vmatpush1.msra.mxu0 %v822
        %824 = vmatprep.subr.mxu0 0.0
        %v825 = vand.u32 %v191, 4294901760
        %826 = vmatpush1.msra.mxu0 %v825
        %827 = vmatprep.subr.mxu0 0.0
        %v828 = vand.u32 %v192, 4294901760
        %829 = vmatpush1.msra.mxu0 %v828
        %830 = vmatprep.subr.mxu0 0.0
        %v831 = vand.u32 %v193, 4294901760
        %832 = vmatpush1.msra.mxu0 %v831
        %833 = vmatprep.subr.mxu0 0.0
        %834 = vmatpush1.msra.mxu0 0.0
        %835 = vmatprep.subr.mxu0 0.0
        %836 = vmatpush1.msra.mxu0 0.0
        %837 = vmatprep.subr.mxu0 0.0
        %838 = vmatpush1.msra.mxu0 0.0
        %839 = vmatprep.subr.mxu0 0.0
        %840 = vmatpush1.msra.mxu0 0.0
        %841 = vmatprep.subr.mxu0 0.0
        %842 = vmatpush1.msra.mxu0 0.0
        %843 = vmatprep.subr.mxu0 0.0
        %844 = vmatpush1.msra.mxu0 0.0
        %845 = vmatprep.subr.mxu0 0.0
        %846 = vmatpush1.msra.mxu0 0.0
        %847 = vmatprep.subr.mxu0 0.0
        %848 = vmatpush1.msra.mxu0 0.0
        %849 = vmatprep.subr.mxu0 0.0
        %850 = vmatpush1.msra.mxu0 0.0
        %851 = vmatprep.subr.mxu0 0.0
        %852 = vmatpush1.msra.mxu0 0.0
        %853 = vmatprep.subr.mxu0 0.0
        %854 = vmatpush1.msra.mxu0 0.0
        %855 = vmatprep.subr.mxu0 0.0
        %856 = vmatpush1.msra.mxu0 0.0
        %857 = vmatprep.subr.mxu0 0.0
        %858 = vmatpush1.msra.mxu0 0.0
        %859 = vmatprep.subr.mxu0 0.0
        %860 = vmatpush1.msra.mxu0 0.0
        %861 = vmatprep.subr.mxu0 0.0
        %862 = vmatpush1.msra.mxu0 0.0
        %863 = vmatprep.subr.mxu0 0.0
        %864 = vmatpush1.msra.mxu0 0.0
        %865 = vmatprep.mubr.f32.mxu0 0.0
        %v866 = vand.u32 %v176, 4294901760
        %867 = vmatmul.mubr.f32.gmra.mrb[0].mxu0 %v866
        %v868 = vpop.f32.mrb[0].mxu0
        %v869 = vadd.f32 %v776, %v868
        %v870 = vpop.f32.mrb[0].mxu0
        %871 = vmatprep.mubr.f32.mxu0 0.0
        %v872 = vand.u32 %v177, 4294901760
        %873 = vmatmul.mubr.f32.gmra.mrb[0].mxu0 %v872
        %v874 = vpop.f32.mrb[0].mxu0
        %v875 = vadd.f32 %v782, %v874
        %v876 = vpop.f32.mrb[0].mxu0
        %877 = vdwg.mxu0
        %vm878 = vcmask 23552
        %v879 = vsel %vm878, %v869, -inf
        %v880 = vsel %vm878, %v875, -inf
        %v881 = vmax.f32 %v879, %v880
        %v882 = vsub.f32 %v869, %v881
        %v883 = vsub.f32 %v875, %v881
        %v884 = vmul.f32 %v882, 1.442695
        %v885 = vpow.pop %v884
        %v886 = vmul.f32 %v883, 1.442695
        %v887 = vpow.pop %v886
        %v888 = vsel %vm878, %v885, 0.0
        %v889 = vsel %vm878, %v887, 0.0
        %v890 = vadd.f32 %v888, %v889
        %v891 = vrcp.pop %v890
        %v892 = vmul.f32 %v885, %v891
        %v893 = vmul.f32 %v887, %v891
        %894 = vst.msk [vmem:[%s175] sm:$0xff] %vm878, %v892
        %895 = vst.msk [vmem:[%s175 + $0x8] sm:$0xff] %vm878, %v893
        %s896 = sand.u32 %s68, 1
        %s897 = sand.u32 %s68, 1
        %s898 = smul.addr %s897, 16
        %s899 = scalar_lea.vmem [#allocation3], %s898
        // Predicated region
        $region67: #{tpu_custom_call.1} parent=61 // pred_check
          %p900 = pneg %p78
        $region68: #{tpu_custom_call.1} parent=61 // pred_check_branch
          %902 = sbr.rel (%p900) target = $region70
        $region69: #{tpu_custom_call.1} parent=61 // pred_region
          %s903 = smul.addr %s13, 8
          %s904 = scalar_lea.vmem %s2, %s903
          // Predicated region
          $region71: #{tpu_custom_call.1} parent=69 // pred_check
            _
          $region72: #{tpu_custom_call.1} parent=69 // pred_check_branch
            %906 = sbr.rel (0) target = $region74
          $region73: #{tpu_custom_call.1} parent=69 // pred_region
            // Predicated region
            $region75: #{tpu_custom_call.1} parent=73 // pred_check
              _
            $region76: #{tpu_custom_call.1} parent=73 // pred_check_branch
              %908 = sbr.rel (0) target = $region78
            $region77: #{tpu_custom_call.1} parent=73 // pred_region
              // Predicated region
              $region90: #{tpu_custom_call.1} parent=77 // pred_check
                _
              $region91: #{tpu_custom_call.1} parent=77 // pred_check_branch
                %925 = sbr.rel (0) target = $region93
              $region92: #{tpu_custom_call.1} parent=77 // pred_region
                loop: start=0, step=1, limit=1
                $region94: #{tpu_custom_call.1} parent=92 // loop_pre_header
                  _
                $region95: #{tpu_custom_call.1} parent=92 // loop_header
                  %s927 = sphi 0, %s931
                  %p928 = scmp.ge.s32.totalorder %s927, 1
                  %s932 = sphi %s899, %s899
                  %s933 = sphi %s904, %s904
                $region96: #{tpu_custom_call.1} parent=92 // loop_header_branch
                  %930 = sbr.rel (%p928) target = $region100
                $region97: #{tpu_custom_call.1} parent=92 // loop_body
                  %v934 = vld [vmem:[%s932] sm:$0xff]
                  %935 = vst [vmem:[%s933] sm:$0xff] %v934
                  %v936 = vld [vmem:[%s932 + $0x8] sm:$0xff]
                  %937 = vst [vmem:[%s933 + $0x10] sm:$0xff] %v936
                $region98: #{tpu_custom_call.1} parent=92 // loop_footer
                  %s931 = sadd.s32 1, %s927
                $region99: #{tpu_custom_call.1} parent=92 // loop_footer_branch
                  %926 = sbr.rel target = $region95
                $region100: #{tpu_custom_call.1} parent=92 // loop_exit
                  _
              $region93: #{tpu_custom_call.1} parent=77 // pred_fallthru
                _
              // Predicated region
              $region101: #{tpu_custom_call.1} parent=77 // pred_check
                _
              $region102: #{tpu_custom_call.1} parent=77 // pred_check_branch
                %939 = sbr.rel target = $region104
              $region103: #{tpu_custom_call.1} parent=77 // pred_region
                _
              $region104: #{tpu_custom_call.1} parent=77 // pred_fallthru
                _
            $region78: #{tpu_custom_call.1} parent=73 // pred_fallthru
              _
            // Predicated region
            $region79: #{tpu_custom_call.1} parent=73 // pred_check
              _
            $region80: #{tpu_custom_call.1} parent=73 // pred_check_branch
              %910 = sbr.rel target = $region82
            $region81: #{tpu_custom_call.1} parent=73 // pred_region
              loop: start=0, step=1, limit=1
              $region83: #{tpu_custom_call.1} parent=81 // loop_pre_header
                _
              $region84: #{tpu_custom_call.1} parent=81 // loop_header
                %s913 = sphi 0, %s917
                %p914 = scmp.ge.s32.totalorder %s913, 1
                %s918 = sphi %s899, %s899
                %s919 = sphi %s904, %s904
              $region85: #{tpu_custom_call.1} parent=81 // loop_header_branch
                %916 = sbr.rel (%p914) target = $region89
              $region86: #{tpu_custom_call.1} parent=81 // loop_body
                %v920 = vld [vmem:[%s918] sm:$0xff]
                %921 = vst [vmem:[%s919] sm:$0xff] %v920
                %v922 = vld [vmem:[%s918 + $0x8] sm:$0xff]
                %923 = vst [vmem:[%s919 + $0x10] sm:$0xff] %v922
              $region87: #{tpu_custom_call.1} parent=81 // loop_footer
                %s917 = sadd.s32 1, %s913
              $region88: #{tpu_custom_call.1} parent=81 // loop_footer_branch
                %912 = sbr.rel target = $region84
              $region89: #{tpu_custom_call.1} parent=81 // loop_exit
                _
            $region82: #{tpu_custom_call.1} parent=73 // pred_fallthru
              _
          $region74: #{tpu_custom_call.1} parent=69 // pred_fallthru
            _
          %940 = vnop
        $region70: #{tpu_custom_call.1} parent=61 // pred_fallthru
          _
      $region62: #{tpu_custom_call.1} parent=5 // pred_fallthru
        _
      %p941 = scmp.le.s32.totalorder 2, %s8
      // Predicated region
      $region105: #{tpu_custom_call.1} parent=5 // pred_check
        %p942 = pneg %p941
      $region106: #{tpu_custom_call.1} parent=5 // pred_check_branch
        %944 = sbr.rel (%p942) target = $region108
      $region107: #{tpu_custom_call.1} parent=5 // pred_region
        %s945 = ssub.s32 %s8, 2
        // Predicated region
        $region109: #{tpu_custom_call.1} parent=107 // pred_check
          %p946 = pneg %p84
        $region110: #{tpu_custom_call.1} parent=107 // pred_check_branch
          %948 = sbr.rel (%p946) target = $region112
        $region111: #{tpu_custom_call.1} parent=107 // pred_region
          %s949 = sand.u32 %s69, 1
          %s950 = sand.u32 %s69, 1
          %s951 = smul.addr %s950, 16
          %s952 = scalar_lea.vmem [#allocation3], %s951
        $region112: #{tpu_custom_call.1} parent=107 // pred_fallthru
          _
      $region108: #{tpu_custom_call.1} parent=5 // pred_fallthru
        _
    $region6: #{tpu_custom_call.1} parent=1 // loop_footer
      %s12 = sadd.s32 1, %s8
    $region7: #{tpu_custom_call.1} parent=1 // loop_footer_branch
      %7 = sbr.rel target = $region3
    $region8: #{tpu_custom_call.1} parent=1 // loop_exit
      _

</llo_original>
